<compile_context>
chip_gen: v5e
topology: v5e:2x2
jax: 0.10.0
libtpu: 0.0.40
codegen_flags: <defaults>
</compile_context>

<pallas_src>
import functools

import jax
import jax.numpy as jnp
from jax.experimental import pallas as pl
from jax.experimental.pallas import tpu as pltpu


_LANES = 128
_SUBLANES = 8
_NUM_CORES = 2                    # leading "parallel" axis; serial loop of 2 on 1-TC chips
_CHUNK_ROWS = 256                 # inner fori_loop chunk (32 vregs/f32 value)
_BLOCK_BYTES = 2 * 1024 * 1024    # per input per pipeline buffer (8 MiB total double-buffered)
_CLAMP = -100.0                   # PyTorch binary_cross_entropy clamps log terms at -100


def _partials_kernel(pred_ref, target_ref, out_ref, *,
                     chunk, n_chunks, block_rows, rows,
                     total_blocks, steps_per_core):
    """Accumulates (sum nbce, sum p*t, sum p+t) into a per-core (1,3,8,128) output block."""
    c = pl.program_id(0)          # core / parallel axis
    s = pl.program_id(1)          # streaming / arbitrary axis

    @pl.when(s == 0)
    def _init():
        out_ref[...] = jnp.zeros_like(out_ref)

    blk = c * steps_per_core + s  # global block id (may exceed total_blocks on the padded core)

    def accumulate(valid_rows):
        def fold(x):
            # (chunk,128) -> (8,128): sublane-aligned vreg adds only (stays on the VPU).
            return jnp.sum(x.reshape(-1, _SUBLANES, _LANES), axis=0)

        def body(ci, carry):
            bce_a, inter_a, denom_a = carry
            start = ci * chunk
            if n_chunks > 1:
                start = pl.multiple_of(start, chunk)
            p = pred_ref[pl.ds(start, chunk), :].astype(jnp.float32)
            t = target_ref[pl.ds(start, chunk), :].astype(jnp.float32)
            if valid_rows is not None:
                # Ragged last block only: zero the garbage rows *before* the logs.
                row = jax.lax.broadcasted_iota(jnp.int32, (chunk, _LANES), 0)
                keep = (ci * chunk + row) < valid_rows
                p = jnp.where(keep, p, 0.0)
                t = jnp.where(keep, t, 0.0)
            log_p = jnp.maximum(jnp.log(p), _CLAMP)
            log_1mp = jnp.maximum(jnp.log(1.0 - p), _CLAMP)
            # Un-negated per-element BCE: t*log(p) + (1-t)*log(1-p); negated once in the wrapper.
            nbce = t * (log_p - log_1mp) + log_1mp
            return (bce_a + fold(nbce),
                    inter_a + fold(p * t),
                    denom_a + fold(p + t))

        zero = jnp.zeros((_SUBLANES, _LANES), jnp.float32)
        init = (zero, zero, zero)
        if n_chunks == 1:
            bce_a, inter_a, denom_a = body(0, init)
        else:
            bce_a, inter_a, denom_a = jax.lax.fori_loop(
                0, n_chunks, body, init, unroll=2)

        out_ref[0, 0] = out_ref[0, 0] + bce_a
        out_ref[0, 1] = out_ref[0, 1] + inter_a
        out_ref[0, 2] = out_ref[0, 2] + denom_a

    ragged = (rows % block_rows) != 0
    if ragged:
        valid_last = rows - (total_blocks - 1) * block_rows

        @pl.when(blk < total_blocks - 1)
        def _steady():
            accumulate(None)              # unmasked steady state

        @pl.when(blk == total_blocks - 1)
        def _last():
            accumulate(valid_last)        # masked path: last (partial) block only
    else:
        if _NUM_CORES * steps_per_core > total_blocks:
            @pl.when(blk < total_blocks)
            def _steady():
                accumulate(None)
        else:
            accumulate(None)              # common case: no mask, no guard


def _partial_sums_jax(p, t):
    """Pure-JAX partial sums for the tiny (<128 element) tail / tiny inputs."""
    p = p.astype(jnp.float32)
    t = t.astype(jnp.float32)
    log_p = jnp.maximum(jnp.log(p), _CLAMP)
    log_1mp = jnp.maximum(jnp.log(1.0 - p), _CLAMP)
    nbce = t * (log_p - log_1mp) + log_1mp
    return jnp.sum(nbce), jnp.sum(p * t), jnp.sum(p + t)


def _scalar_combine(bce_neg_sum, inter, denom, n_elem):
    eps = 1e-05
    bce = -bce_neg_sum / n_elem
    dice = 1.0 - (2.0 * inter + eps) / (denom + eps)
    return 5.0 * bce + 5.0 * dice


def bce_dice_loss(pred, target, reduction=None):
    """Pallas implementation of BCE_Dice_Loss.forward (NCHW inputs)."""
    assert pred.shape == target.shape
    n_elem = pred.size

    p_flat = jnp.ravel(pred)
    t_flat = jnp.ravel(target)

    rows = n_elem // _LANES
    n_main = rows * _LANES
    tail = n_elem - n_main            # < 128 elements, handled in pure JAX

    if rows < _SUBLANES:
        # Tiny input (< 1024 elements): a kernel launch isn't worth it.
        bce_neg, inter, denom = _partial_sums_jax(p_flat, t_flat)
        loss = _scalar_combine(bce_neg, inter, denom, n_elem)
    else:
        if tail:
            p_main, t_main = p_flat[:n_main], t_flat[:n_main]
        else:
            p_main, t_main = p_flat, t_flat          # free reshape, no copy
        p_main = p_main.reshape(rows, _LANES)
        t_main = t_main.reshape(rows, _LANES)

        itemsize = max(jnp.dtype(pred.dtype).itemsize,
                       jnp.dtype(target.dtype).itemsize)
        max_rows = _BLOCK_BYTES // (_LANES * itemsize)       # 4096 f32 / 8192 bf16
        block_rows = min(max_rows, (rows // _SUBLANES) * _SUBLANES)  # multiple of 8
        chunk = _CHUNK_ROWS if block_rows % _CHUNK_ROWS == 0 else block_rows
        n_chunks = block_rows // chunk

        total_blocks = pl.cdiv(rows, block_rows)
        steps_per_core = pl.cdiv(total_blocks, _NUM_CORES)

        def in_index(c, s):
            # Clamp so the padded (out-of-range) iterations DMA a valid block.
            blk = jnp.minimum(c * steps_per_core + s, total_blocks - 1)
            return (blk, 0)

        kernel = functools.partial(
            _partials_kernel,
            chunk=chunk, n_chunks=n_chunks, block_rows=block_rows, rows=rows,
            total_blocks=total_blocks, steps_per_core=steps_per_core)

        parts = pl.pallas_call(
            kernel,
            out_shape=jax.ShapeDtypeStruct(
                (_NUM_CORES, 3, _SUBLANES, _LANES), jnp.float32),
            grid_spec=pltpu.PrefetchScalarGridSpec(
                num_scalar_prefetch=0,
                grid=(_NUM_CORES, steps_per_core),
                in_specs=[
                    pl.BlockSpec((block_rows, _LANES), in_index),
                    pl.BlockSpec((block_rows, _LANES), in_index),
                ],
                out_specs=pl.BlockSpec(
                    (1, 3, _SUBLANES, _LANES), lambda c, s: (c, 0, 0, 0)),
            ),
            compiler_params=pltpu.CompilerParams(
                dimension_semantics=("parallel", "arbitrary")),
        )(p_main, t_main)

        sums = jnp.sum(parts, axis=(0, 2, 3))        # (3,): tiny XLA reduce
        bce_neg, inter, denom = sums[0], sums[1], sums[2]

        if tail:
            tb, ti, td = _partial_sums_jax(p_flat[n_main:], t_flat[n_main:])
            bce_neg = bce_neg + tb
            inter = inter + ti
            denom = denom + td

        loss = _scalar_combine(bce_neg, inter, denom, n_elem)

    if reduction is None:
        return loss
    elif reduction == "mean":
        return jnp.mean(loss)
    elif reduction == "sum":
        return jnp.sum(loss)
    else:
        raise ValueError(f"Unknown reduction: {reduction}")


def _reference(pred, target):
    """Pure-JAX reference mirroring the PyTorch forward."""
    p = pred.astype(jnp.float32)
    t = target.astype(jnp.float32)
    log_p = jnp.maximum(jnp.log(p), -100.0)
    log_1mp = jnp.maximum(jnp.log(1.0 - p), -100.0)
    bce = jnp.mean(-(t * log_p + (1.0 - t) * log_1mp))
    inter = jnp.sum(p * t)
    eps = 1e-05
    dice = 1.0 - (2.0 * inter + eps) / (jnp.sum(p) + jnp.sum(t) + eps)
    return 5.0 * bce + 5.0 * dice


if __name__ == "__main__":
    key = jax.random.PRNGKey(0)
    k1, k2 = jax.random.split(key)

    # NCHW, small shapes: batch=2, channels=4, spatial=16x16
    shape = (2, 4, 16, 16)
    pred = jax.nn.sigmoid(jax.random.normal(k1, shape, dtype=jnp.float32))
    target = (jax.random.uniform(k2, shape) > 0.5).astype(jnp.float32)

    out = bce_dice_loss(pred, target)
    out = jax.block_until_ready(out)

    ref = _reference(pred, target)
    assert jnp.allclose(out, ref, rtol=1e-5, atol=1e-5), (out, ref)

    print("KERNEL_OK")
</pallas_src>

<mosaic_0001>
module attributes {stable_mosaic.version = 11 : i64} {
  func.func @_partials_kernel(%arg0: i32, %arg1: i32, %arg2: memref<16x128xf32, #tpu.memory_space<vmem>>, %arg3: memref<16x128xf32, #tpu.memory_space<vmem>>, %arg4: memref<1x3x8x128xf32, #tpu.memory_space<vmem>>) attributes {dimension_semantics = [#tpu.dimension_semantics<parallel>, #tpu.dimension_semantics<arbitrary>], iteration_bounds = array<i64: 2, 1>, scalar_prefetch = 0 : i64, scratch_operands = 0 : i64, tpu.core_type = #tpu.core_type<tc>, window_params = [{transform_indices = @transform_0, window_bounds = array<i64: 16, 128>}, {transform_indices = @transform_1, window_bounds = array<i64: 16, 128>}, {transform_indices = @transform_2, window_bounds = array<i64: 1, 3, 8, 128>}]} {
    %c0_i32 = arith.constant 0 : i32
    %0 = arith.cmpi eq, %arg1, %c0_i32 : i32
    %1 = arith.extui %0 : i1 to i32
    %c0_i32_0 = arith.constant 0 : i32
    %2 = arith.cmpi ne, %1, %c0_i32_0 : i32
    scf.if %2 {
      %cst = arith.constant 0.000000e+00 : f32
      %8 = vector.broadcast %cst : f32 to vector<1x3x8x128xf32>
      %c0 = arith.constant 0 : index
      %c0_3 = arith.constant 0 : index
      %c0_4 = arith.constant 0 : index
      %c0_5 = arith.constant 0 : index
      %9 = vector.load %arg4[%c0, %c0_3, %c0_4, %c0_5] : memref<1x3x8x128xf32, #tpu.memory_space<vmem>>, vector<1x3x8x128xf32>
      tpu.vector_store %arg4[%c0, %c0_3, %c0_4, %c0_5], %8 {strides = array<i32>} : memref<1x3x8x128xf32, #tpu.memory_space<vmem>>, vector<1x3x8x128xf32>,
    } else {
    }
    %c1_i32 = arith.constant 1 : i32
    %3 = arith.muli %arg0, %c1_i32 : i32
    %4 = arith.addi %3, %arg1 : i32
    %c1_i32_1 = arith.constant 1 : i32
    %5 = arith.cmpi slt, %4, %c1_i32_1 : i32
    %6 = arith.extui %5 : i1 to i32
    %c0_i32_2 = arith.constant 0 : i32
    %7 = arith.cmpi ne, %6, %c0_i32_2 : i32
    scf.if %7 {
      %cst = arith.constant 0.000000e+00 : f32
      %8 = vector.broadcast %cst : f32 to vector<8x128xf32>
      %c0 = arith.constant 0 : index
      %c0_3 = arith.constant 0 : index
      %9 = vector.load %arg2[%c0, %c0_3] : memref<16x128xf32, #tpu.memory_space<vmem>>, vector<16x128xf32>
      %c0_4 = arith.constant 0 : index
      %c0_5 = arith.constant 0 : index
      %10 = vector.load %arg3[%c0_4, %c0_5] : memref<16x128xf32, #tpu.memory_space<vmem>>, vector<16x128xf32>
      %11 = math.log %9 : vector<16x128xf32>
      %cst_6 = arith.constant -1.000000e+02 : f32
      %12 = vector.broadcast %cst_6 : f32 to vector<16x128xf32>
      %13 = arith.maximumf %11, %12 : vector<16x128xf32>
      %cst_7 = arith.constant 1.000000e+00 : f32
      %14 = vector.broadcast %cst_7 : f32 to vector<16x128xf32>
      %15 = arith.subf %14, %9 : vector<16x128xf32>
      %16 = math.log %15 : vector<16x128xf32>
      %cst_8 = arith.constant -1.000000e+02 : f32
      %17 = vector.broadcast %cst_8 : f32 to vector<16x128xf32>
      %18 = arith.maximumf %16, %17 : vector<16x128xf32>
      %19 = arith.subf %13, %18 : vector<16x128xf32>
      %20 = arith.mulf %10, %19 : vector<16x128xf32>
      %21 = arith.addf %20, %18 : vector<16x128xf32>
      %22 = vector.shape_cast %21 : vector<16x128xf32> to vector<2x8x128xf32>
      %cst_9 = arith.constant dense<0.000000e+00> : vector<8x128xf32>
      %23 = vector.multi_reduction <add>, %22, %cst_9 [0] : vector<2x8x128xf32> to vector<8x128xf32>
      %24 = arith.addf %8, %23 : vector<8x128xf32>
      %25 = arith.mulf %9, %10 : vector<16x128xf32>
      %26 = vector.shape_cast %25 : vector<16x128xf32> to vector<2x8x128xf32>
      %cst_10 = arith.constant dense<0.000000e+00> : vector<8x128xf32>
      %27 = vector.multi_reduction <add>, %26, %cst_10 [0] : vector<2x8x128xf32> to vector<8x128xf32>
      %28 = arith.addf %8, %27 : vector<8x128xf32>
      %29 = arith.addf %9, %10 : vector<16x128xf32>
      %30 = vector.shape_cast %29 : vector<16x128xf32> to vector<2x8x128xf32>
      %cst_11 = arith.constant dense<0.000000e+00> : vector<8x128xf32>
      %31 = vector.multi_reduction <add>, %30, %cst_11 [0] : vector<2x8x128xf32> to vector<8x128xf32>
      %32 = arith.addf %8, %31 : vector<8x128xf32>
      %c0_12 = arith.constant 0 : index
      %c0_13 = arith.constant 0 : index
      %c0_14 = arith.constant 0 : index
      %c0_15 = arith.constant 0 : index
      %33 = vector.load %arg4[%c0_12, %c0_13, %c0_14, %c0_15] : memref<1x3x8x128xf32, #tpu.memory_space<vmem>>, vector<1x1x8x128xf32>
      %34 = vector.shape_cast %33 : vector<1x1x8x128xf32> to vector<8x128xf32>
      %35 = arith.addf %34, %24 : vector<8x128xf32>
      %c0_16 = arith.constant 0 : index
      %c0_17 = arith.constant 0 : index
      %c0_18 = arith.constant 0 : index
      %c0_19 = arith.constant 0 : index
      %36 = vector.load %arg4[%c0_16, %c0_17, %c0_18, %c0_19] : memref<1x3x8x128xf32, #tpu.memory_space<vmem>>, vector<1x1x8x128xf32>
      %37 = vector.shape_cast %36 : vector<1x1x8x128xf32> to vector<8x128xf32>
      %38 = vector.shape_cast %35 : vector<8x128xf32> to vector<1x1x8x128xf32>
      tpu.vector_store %arg4[%c0_16, %c0_17, %c0_18, %c0_19], %38 {strides = array<i32>} : memref<1x3x8x128xf32, #tpu.memory_space<vmem>>, vector<1x1x8x128xf32>,
      %c0_20 = arith.constant 0 : index
      %c1 = arith.constant 1 : index
      %c0_21 = arith.constant 0 : index
      %c0_22 = arith.constant 0 : index
      %39 = vector.load %arg4[%c0_20, %c1, %c0_21, %c0_22] : memref<1x3x8x128xf32, #tpu.memory_space<vmem>>, vector<1x1x8x128xf32>
      %40 = vector.shape_cast %39 : vector<1x1x8x128xf32> to vector<8x128xf32>
      %41 = arith.addf %40, %28 : vector<8x128xf32>
      %c0_23 = arith.constant 0 : index
      %c1_24 = arith.constant 1 : index
      %c0_25 = arith.constant 0 : index
      %c0_26 = arith.constant 0 : index
      %42 = vector.load %arg4[%c0_23, %c1_24, %c0_25, %c0_26] : memref<1x3x8x128xf32, #tpu.memory_space<vmem>>, vector<1x1x8x128xf32>
      %43 = vector.shape_cast %42 : vector<1x1x8x128xf32> to vector<8x128xf32>
      %44 = vector.shape_cast %41 : vector<8x128xf32> to vector<1x1x8x128xf32>
      tpu.vector_store %arg4[%c0_23, %c1_24, %c0_25, %c0_26], %44 {strides = array<i32>} : memref<1x3x8x128xf32, #tpu.memory_space<vmem>>, vector<1x1x8x128xf32>,
      %c0_27 = arith.constant 0 : index
      %c2 = arith.constant 2 : index
      %c0_28 = arith.constant 0 : index
      %c0_29 = arith.constant 0 : index
      %45 = vector.load %arg4[%c0_27, %c2, %c0_28, %c0_29] : memref<1x3x8x128xf32, #tpu.memory_space<vmem>>, vector<1x1x8x128xf32>
      %46 = vector.shape_cast %45 : vector<1x1x8x128xf32> to vector<8x128xf32>
      %47 = arith.addf %46, %32 : vector<8x128xf32>
      %c0_30 = arith.constant 0 : index
      %c2_31 = arith.constant 2 : index
      %c0_32 = arith.constant 0 : index
      %c0_33 = arith.constant 0 : index
      %48 = vector.load %arg4[%c0_30, %c2_31, %c0_32, %c0_33] : memref<1x3x8x128xf32, #tpu.memory_space<vmem>>, vector<1x1x8x128xf32>
      %49 = vector.shape_cast %48 : vector<1x1x8x128xf32> to vector<8x128xf32>
      %50 = vector.shape_cast %47 : vector<8x128xf32> to vector<1x1x8x128xf32>
      tpu.vector_store %arg4[%c0_30, %c2_31, %c0_32, %c0_33], %50 {strides = array<i32>} : memref<1x3x8x128xf32, #tpu.memory_space<vmem>>, vector<1x1x8x128xf32>,
    } else {
    }
    return
  }
  func.func @transform_0(%arg0: i32, %arg1: i32) -> (i32, i32) {
    %c1_i32 = arith.constant 1 : i32
    %0 = arith.muli %arg0, %c1_i32 : i32
    %1 = arith.addi %0, %arg1 : i32
    %c0_i32 = arith.constant 0 : i32
    %2 = arith.minsi %1, %c0_i32 : i32
    %c0_i32_0 = arith.constant 0 : i32
    %c0_i32_1 = arith.constant 0 : i32
    return %2, %c0_i32_0 : i32, i32
  }
  func.func @transform_1(%arg0: i32, %arg1: i32) -> (i32, i32) {
    %c1_i32 = arith.constant 1 : i32
    %0 = arith.muli %arg0, %c1_i32 : i32
    %1 = arith.addi %0, %arg1 : i32
    %c0_i32 = arith.constant 0 : i32
    %2 = arith.minsi %1, %c0_i32 : i32
    %c0_i32_0 = arith.constant 0 : i32
    %c0_i32_1 = arith.constant 0 : i32
    return %2, %c0_i32_0 : i32, i32
  }
  func.func @transform_2(%arg0: i32, %arg1: i32) -> (i32, i32, i32, i32) {
    %c0_i32 = arith.constant 0 : i32
    %c0_i32_0 = arith.constant 0 : i32
    %c0_i32_1 = arith.constant 0 : i32
    %c0_i32_2 = arith.constant 0 : i32
    return %arg0, %c0_i32, %c0_i32_0, %c0_i32_1 : i32, i32, i32, i32
  }
}

</mosaic_0001>

<llo_original>
// kernel: tpu_custom_call.1
$region0: #{tpu_custom_call.1}
  #allocation0 [shape = 'u32[]', space=smem, size = 0x4, offset = 0x4, fixed_abs, tag = 'smem constant byte address 0x4 - core index']
  #allocation1 [shape = 'u32[72,128]{1,0:T(1,128)}', space=vmem, size = 0x9000, scoped, tag = 'internal scratch']
  %s0 = inlined_call_operand.hbm [shape: f32[16,128], index: 0, kind: input, shape index: {}]
  %s1 = inlined_call_operand.hbm [shape: f32[16,128], index: 1, kind: input, shape index: {}]
  %s2 = inlined_call_operand.hbm [shape: f32[2,3,8,128], index: 2, kind: output, shape index: {}]
  %s3 = sld [smem:[#allocation0]]
  $region57: #{tpu_custom_call.1} parent=0
    _
  %s5 = ssub.s32 1, %s3
  %s6 = scalar_select 0, %s5, %s3
  $region1: #{tpu_custom_call.1} parent=0
    #allocation2 [shape = 'u8[16384]{0}', space=vmem, size = 0x4000, scoped, tag = 'input window, operand 0']
    #allocation3 [shape = 's32[2]{0}', space=sflag, size = 0x8, scoped, tag = 'scoped memory for tpu_custom_call.1']
    #allocation4 [shape = 's32[2]{0}', space=sflag, size = 0x8, scoped, tag = 'scoped memory for tpu_custom_call.1']
    #allocation5 [shape = 'u8[16384]{0}', space=vmem, size = 0x4000, scoped, tag = 'input window, operand 1']
    #allocation6 [shape = 's32[2]{0}', space=sflag, size = 0x8, scoped, tag = 'scoped memory for tpu_custom_call.1']
    #allocation7 [shape = 'u8[24576]{0}', space=vmem, size = 0x6000, scoped, tag = 'output window, operand 0']
    %7 = vsyncpa [#allocation3], 0
    %s8 = scalar_lea.sflag [#allocation3], 1
    %9 = vsyncpa %s8, 0
    %10 = vsyncpa [#allocation6], 0
    %s11 = scalar_lea.sflag [#allocation6], 1
    %12 = vsyncpa %s11, 0
    %13 = vsyncpa [#allocation4], 0
    %s14 = scalar_lea.sflag [#allocation4], 1
    %15 = vsyncpa %s14, 0
    loop: start=0, step=1, limit=4
    $region2: #{tpu_custom_call.1} parent=1 // loop_pre_header
      _
    $region3: #{tpu_custom_call.1} parent=1 // loop_header
      %s17 = sphi 0, %s21
      %p18 = scmp.ge.s32.totalorder %s17, 4
      %s24 = sphi 0, %s36
      %s25 = sphi 0, %s32
      %s26 = sphi 0, %s24
      %s27 = sphi 0, %s25
      %s28 = sphi 0, %s26
      %s29 = sphi 0, %s27
      %s45 = sphi 0, %s47
      %s48 = sphi 0, %s45
      %s49 = sphi 0, %s48
      %s65 = sphi 0, %s49
      %s77 = sphi 0, %s79
      %s80 = sphi 0, %s77
      %s81 = sphi 0, %s80
      %s97 = sphi 0, %s81
      %s103 = sphi 0, %s105
      %s106 = sphi 0, %s103
      %s107 = sphi 0, %s106
      %s123 = sphi 0, %s107
    $region4: #{tpu_custom_call.1} parent=1 // loop_header_branch
      %20 = sbr.rel (%p18) target = $region8
    $region5: #{tpu_custom_call.1} parent=1 // loop_body
      %s22 = ssub.s32 %s17, 1
      %s23 = ssub.s32 %s17, 2
      %s30 = sadd.s32 1, %s25
      %p31 = scmp.ge.s32.totalorder %s30, 1
      %s32 = scalar_select %p31, 0, %s30
      %s33 = sadd.s32 1, %s24
      %s34 = scalar_select %p31, %s33, %s24
      %p35 = scmp.ge.s32.totalorder %s34, 2
      %s36 = scalar_select %p35, 0, %s34
      %s37 = sadd.s32 %s24, %s25
      %p38 = scmp.lt.s32.totalorder %s37, 0
      %s39 = scalar_select %p38, %s37, 0
      %s40 = sadd.s32 %s36, %s32
      %p41 = scmp.lt.s32.totalorder %s40, 0
      %s42 = scalar_select %p41, %s40, 0
      %s43 = ssub.s32 %s39, %s42
      %p44 = scmp.eq.s32.totalorder %s43, 0
      %s46 = sadd.s32 %s45, 1
      %s47 = scalar_select %p44, %s45, %s46
      %p50 = pneg %p44
      %p51 = scmp.eq.s32.totalorder %s17, 1
      %p52 = por %p50, %p51
      %p53 = scmp.ne.s32.totalorder %s45, %s48
      %p54 = scmp.eq.s32.totalorder %s17, 0
      %p55 = por %p53, %p54
      %p56 = scmp.ne.s32.totalorder %s45, %s48
      %p57 = scmp.eq.s32.totalorder %s22, 1
      %p58 = por %p56, %p57
      %p59 = scmp.ne.s32.totalorder %s48, %s49
      %p60 = scmp.eq.s32.totalorder %s22, 0
      %p61 = por %p59, %p60
      %p62 = scmp.ne.s32.totalorder %s48, %s49
      %p63 = scmp.eq.s32.totalorder %s23, 1
      %p64 = por %p62, %p63
      %p66 = scmp.ne.s32.totalorder %s49, %s65
      %p67 = scmp.eq.s32.totalorder %s23, 0
      %p68 = por %p66, %p67
      %s69 = sadd.s32 %s24, %s25
      %p70 = scmp.lt.s32.totalorder %s69, 0
      %s71 = scalar_select %p70, %s69, 0
      %s72 = sadd.s32 %s36, %s32
      %p73 = scmp.lt.s32.totalorder %s72, 0
      %s74 = scalar_select %p73, %s72, 0
      %s75 = ssub.s32 %s71, %s74
      %p76 = scmp.eq.s32.totalorder %s75, 0
      %s78 = sadd.s32 %s77, 1
      %s79 = scalar_select %p76, %s77, %s78
      %p82 = pneg %p76
      %p83 = scmp.eq.s32.totalorder %s17, 1
      %p84 = por %p82, %p83
      %p85 = scmp.ne.s32.totalorder %s77, %s80
      %p86 = scmp.eq.s32.totalorder %s17, 0
      %p87 = por %p85, %p86
      %p88 = scmp.ne.s32.totalorder %s77, %s80
      %p89 = scmp.eq.s32.totalorder %s22, 1
      %p90 = por %p88, %p89
      %p91 = scmp.ne.s32.totalorder %s80, %s81
      %p92 = scmp.eq.s32.totalorder %s22, 0
      %p93 = por %p91, %p92
      %p94 = scmp.ne.s32.totalorder %s80, %s81
      %p95 = scmp.eq.s32.totalorder %s23, 1
      %p96 = por %p94, %p95
      %p98 = scmp.ne.s32.totalorder %s81, %s97
      %p99 = scmp.eq.s32.totalorder %s23, 0
      %p100 = por %p98, %p99
      %s101 = ssub.s32 %s24, %s36
      %p102 = scmp.eq.s32.totalorder %s101, 0
      %s104 = sadd.s32 %s103, 1
      %s105 = scalar_select %p102, %s103, %s104
      %p108 = pneg %p102
      %p109 = scmp.eq.s32.totalorder %s17, 1
      %p110 = por %p108, %p109
      %p111 = scmp.ne.s32.totalorder %s103, %s106
      %p112 = scmp.eq.s32.totalorder %s17, 0
      %p113 = por %p111, %p112
      %p114 = scmp.ne.s32.totalorder %s103, %s106
      %p115 = scmp.eq.s32.totalorder %s22, 1
      %p116 = por %p114, %p115
      %p117 = scmp.ne.s32.totalorder %s106, %s107
      %p118 = scmp.eq.s32.totalorder %s22, 0
      %p119 = por %p117, %p118
      %p120 = scmp.ne.s32.totalorder %s106, %s107
      %p121 = scmp.eq.s32.totalorder %s23, 1
      %p122 = por %p120, %p121
      %p124 = scmp.ne.s32.totalorder %s107, %s123
      %p125 = scmp.eq.s32.totalorder %s23, 0
      %p126 = por %p124, %p125
      %p127 = scmp.le.s32.totalorder 1, %s17
      %p128 = scmp.lt.s32.totalorder %s17, 3
      %p129 = pnand %p127, %p128
      %p130 = pneg %p129
      // Predicated region
      $region9: #{tpu_custom_call.1} parent=5 // pred_check
        _
      $region10: #{tpu_custom_call.1} parent=5 // pred_check_branch
        %132 = sbr.rel (%p129) target = $region12
      $region11: #{tpu_custom_call.1} parent=5 // pred_region
        %s133 = ssub.s32 %s17, 1
      $region12: #{tpu_custom_call.1} parent=5 // pred_fallthru
        _
      %p134 = scmp.lt.s32.totalorder %s17, 2
      // Predicated region
      $region13: #{tpu_custom_call.1} parent=5 // pred_check
        %p135 = pneg %p134
      $region14: #{tpu_custom_call.1} parent=5 // pred_check_branch
        %137 = sbr.rel (%p135) target = $region16
      $region15: #{tpu_custom_call.1} parent=5 // pred_region
        // Predicated region
        $region17: #{tpu_custom_call.1} parent=15 // pred_check
          %p138 = pneg %p55
        $region18: #{tpu_custom_call.1} parent=15 // pred_check_branch
          %140 = sbr.rel (%p138) target = $region20
        $region19: #{tpu_custom_call.1} parent=15 // pred_region
          %s141 = sand.u32 %s45, 1
          %s142 = scalar_lea.sflag [#allocation3], %s141
          %s143 = sand.u32 %s45, 1
          %s144 = smul.addr %s143, 16
          %s145 = scalar_lea.vmem [#allocation2], %s144
          %s146 = sadd.s32 %s24, %s25
          %p147 = scmp.lt.s32.totalorder %s146, 0
          %s148 = scalar_select %p147, %s146, 0
          %s149 = smul.u32 2, %s148
          %151 = vsyncadd %s142, 0
          %s152 = smul.addr %s149, 8
          %s153 = scalar_lea.hbm %s0, %s152
          %s154 = sshll.u32 %s153, 4
          %s155 = int_to_ptr.hbm [resolvable:$true] %s154
          %s156 = sshll.u32 %s145, 4
          %s157 = int_to_ptr.vmem [resolvable:$true] %s156
          %162 = dma.hbm_to_vmem [thread:$0]  %s155, 256, %s157, %s142, 128, 128, 8
        $region20: #{tpu_custom_call.1} parent=15 // pred_fallthru
          _
        // Predicated region
        $region21: #{tpu_custom_call.1} parent=15 // pred_check
          %p163 = pneg %p87
        $region22: #{tpu_custom_call.1} parent=15 // pred_check_branch
          %165 = sbr.rel (%p163) target = $region24
        $region23: #{tpu_custom_call.1} parent=15 // pred_region
          %s166 = sand.u32 %s77, 1
          %s167 = scalar_lea.sflag [#allocation6], %s166
          %s168 = sand.u32 %s77, 1
          %s169 = smul.addr %s168, 16
          %s170 = scalar_lea.vmem [#allocation5], %s169
          %s171 = sadd.s32 %s24, %s25
          %p172 = scmp.lt.s32.totalorder %s171, 0
          %s173 = scalar_select %p172, %s171, 0
          %s174 = smul.u32 2, %s173
          %176 = vsyncadd %s167, 0
          %s177 = smul.addr %s174, 8
          %s178 = scalar_lea.hbm %s1, %s177
          %s179 = sshll.u32 %s178, 4
          %s180 = int_to_ptr.hbm [resolvable:$true] %s179
          %s181 = sshll.u32 %s170, 4
          %s182 = int_to_ptr.vmem [resolvable:$true] %s181
          %187 = dma.hbm_to_vmem [thread:$0]  %s180, 256, %s182, %s167, 128, 128, 8
        $region24: #{tpu_custom_call.1} parent=15 // pred_fallthru
          _
      $region16: #{tpu_custom_call.1} parent=5 // pred_fallthru
        _
      %p188 = scmp.le.s32.totalorder 1, %s17
      %p189 = scmp.lt.s32.totalorder %s17, 3
      %p190 = pnand %p188, %p189
      %p191 = pneg %p190
      // Predicated region
      $region25: #{tpu_custom_call.1} parent=5 // pred_check
        _
      $region26: #{tpu_custom_call.1} parent=5 // pred_check_branch
        %193 = sbr.rel (%p190) target = $region28
      $region27: #{tpu_custom_call.1} parent=5 // pred_region
        %s194 = ssub.s32 %s17, 1
        %s195 = sand.u32 %s48, 1
        %s196 = scalar_lea.sflag [#allocation3], %s195
        %s197 = sand.u32 %s48, 1
        %s198 = smul.addr %s197, 16
        %s199 = scalar_lea.vmem [#allocation2], %s198
        // Predicated region
        $region29: #{tpu_custom_call.1} parent=27 // pred_check
          %p200 = pneg %p61
        $region30: #{tpu_custom_call.1} parent=27 // pred_check_branch
          %202 = sbr.rel (%p200) target = $region32
        $region31: #{tpu_custom_call.1} parent=27 // pred_region
          %204 = dma.done %s196, 256
        $region32: #{tpu_custom_call.1} parent=27 // pred_fallthru
          _
        %s205 = sand.u32 %s80, 1
        %s206 = scalar_lea.sflag [#allocation6], %s205
        %s207 = sand.u32 %s80, 1
        %s208 = smul.addr %s207, 16
        %s209 = scalar_lea.vmem [#allocation5], %s208
        // Predicated region
        $region33: #{tpu_custom_call.1} parent=27 // pred_check
          %p210 = pneg %p93
        $region34: #{tpu_custom_call.1} parent=27 // pred_check_branch
          %212 = sbr.rel (%p210) target = $region36
        $region35: #{tpu_custom_call.1} parent=27 // pred_region
          %214 = dma.done %s206, 256
        $region36: #{tpu_custom_call.1} parent=27 // pred_fallthru
          _
        %s215 = sand.u32 %s48, 1
        %s216 = scalar_lea.sflag [#allocation3], %s215
        %s217 = sand.u32 %s48, 1
        %s218 = smul.addr %s217, 16
        %s219 = scalar_lea.vmem [#allocation2], %s218
        %p220 = pneg %p61
        %p221 = pneg %p58
        %s222 = sand.u32 %s80, 1
        %s223 = scalar_lea.sflag [#allocation6], %s222
        %s224 = sand.u32 %s80, 1
        %s225 = smul.addr %s224, 16
        %s226 = scalar_lea.vmem [#allocation5], %s225
        %p227 = pneg %p93
        %p228 = pneg %p90
        %p229 = pneg %p119
        %p230 = pneg %p116
        %s231 = sand.u32 %s106, 1
        %s232 = scalar_lea.sflag [#allocation4], %s231
        %s233 = sand.u32 %s106, 1
        %s234 = smul.addr %s233, 24
        %s235 = scalar_lea.vmem [#allocation7], %s234
        %s236 = sadd.s32 %s26, %s27
        %p237 = scmp.lt.s32.totalorder %s236, 0
        %s238 = scalar_select %p237, %s236, 0
        %s239 = smul.u32 2, %s238
        %s240 = sadd.s32 %s26, %s27
        %p241 = scmp.lt.s32.totalorder %s240, 0
        %s242 = scalar_select %p241, %s240, 0
        %s243 = smul.u32 2, %s242
        %p244 = scmp.eq.s32.totalorder %s27, 0
        // Predicated region
        $region37: #{tpu_custom_call.1} parent=27 // pred_check
          %p245 = pneg %p244
        $region38: #{tpu_custom_call.1} parent=27 // pred_check_branch
          %247 = sbr.rel (%p245) target = $region40
        $region39: #{tpu_custom_call.1} parent=27 // pred_region
          %248 = vst [vmem:[%s235] sm:$0xff] 0.0
          %249 = vst [vmem:[%s235 + $0x8] sm:$0xff] 0.0
          %250 = vst [vmem:[%s235 + $0x10] sm:$0xff] 0.0
        $region40: #{tpu_custom_call.1} parent=27 // pred_fallthru
          _
        %s251 = sadd.s32 %s26, %s27
        %p252 = scmp.lt.s32.totalorder %s251, 1
        // Predicated region
        $region41: #{tpu_custom_call.1} parent=27 // pred_check
          %p253 = pneg %p252
        $region42: #{tpu_custom_call.1} parent=27 // pred_check_branch
          %255 = sbr.rel (%p253) target = $region44
        $region43: #{tpu_custom_call.1} parent=27 // pred_region
          %v256 = vld [vmem:[%s199] sm:$0xff]
          %v257 = vld [vmem:[%s199 + $0x8] sm:$0xff]
          %v258 = vld [vmem:[%s209] sm:$0xff]
          %v259 = vld [vmem:[%s209 + $0x8] sm:$0xff]
          %v260 = vlog2.pop %v256
          %v261 = vmul.f32 %v260, 0.6931472
          %v262 = vlog2.pop %v257
          %v263 = vmul.f32 %v262, 0.6931472
          %v264 = vmax.f32 %v261, -100.0
          %v265 = vmax.f32 %v263, -100.0
          %v266 = vsub.f32 1.0, %v256
          %v267 = vsub.f32 1.0, %v257
          %v268 = vlog2.pop %v266
          %v269 = vmul.f32 %v268, 0.6931472
          %v270 = vlog2.pop %v267
          %v271 = vmul.f32 %v270, 0.6931472
          %v272 = vmax.f32 %v269, -100.0
          %v273 = vmax.f32 %v271, -100.0
          %v274 = vsub.f32 %v264, %v272
          %v275 = vsub.f32 %v265, %v273
          %v276 = vmul.f32 %v258, %v274
          %v277 = vmul.f32 %v259, %v275
          %v278 = vadd.f32 %v276, %v272
          %v279 = vadd.f32 %v277, %v273
          %v280 = vadd.f32 %v278, %v279
          %v281 = vadd.f32 %v280, 0.0
          %v282 = vmul.f32 %v256, %v258
          %v283 = vmul.f32 %v257, %v259
          %v284 = vadd.f32 %v282, %v283
          %v285 = vadd.f32 %v284, 0.0
          %v286 = vadd.f32 %v256, %v258
          %v287 = vadd.f32 %v257, %v259
          %v288 = vadd.f32 %v286, %v287
          %v289 = vadd.f32 %v288, 0.0
          %v290 = vld [vmem:[%s235] sm:$0xff]
          %v291 = vadd.f32 %v290, %v281
          %292 = vst [vmem:[%s235] sm:$0xff] %v291
          %s293 = scalar_lea.vmem %s235, 8 [#allocation7]
          %v294 = vld [vmem:[%s293] sm:$0xff]
          %v295 = vadd.f32 %v294, %v285
          %296 = vst [vmem:[%s293] sm:$0xff] %v295
          %s297 = scalar_lea.vmem %s235, 16 [#allocation7]
          %v298 = vld [vmem:[%s297] sm:$0xff]
          %v299 = vadd.f32 %v298, %v289
          %300 = vst [vmem:[%s297] sm:$0xff] %v299
        $region44: #{tpu_custom_call.1} parent=27 // pred_fallthru
          _
        %s301 = sand.u32 %s106, 1
        %s302 = scalar_lea.sflag [#allocation4], %s301
        %s303 = sand.u32 %s106, 1
        %s304 = smul.addr %s303, 24
        %s305 = scalar_lea.vmem [#allocation7], %s304
        // Predicated region
        $region45: #{tpu_custom_call.1} parent=27 // pred_check
          %p306 = pneg %p116
        $region46: #{tpu_custom_call.1} parent=27 // pred_check_branch
          %308 = sbr.rel (%p306) target = $region48
        $region47: #{tpu_custom_call.1} parent=27 // pred_region
          %310 = vsyncadd %s302, 0
          %s311 = smul.addr %s26, 3
          %s312 = smul.addr %s311, 8
          %s313 = scalar_lea.hbm %s2, %s312
          %s314 = sshll.u32 %s305, 4
          %s315 = int_to_ptr.vmem [resolvable:$true] %s314
          %s316 = sshll.u32 %s313, 4
          %s317 = int_to_ptr.hbm [resolvable:$true] %s316
          %322 = dma.vmem_to_hbm [thread:$0]  %s315, 384, %s317, %s302, 128, 128, 8
        $region48: #{tpu_custom_call.1} parent=27 // pred_fallthru
          _
      $region28: #{tpu_custom_call.1} parent=5 // pred_fallthru
        _
      %p323 = scmp.le.s32.totalorder 2, %s17
      // Predicated region
      $region49: #{tpu_custom_call.1} parent=5 // pred_check
        %p324 = pneg %p323
      $region50: #{tpu_custom_call.1} parent=5 // pred_check_branch
        %326 = sbr.rel (%p324) target = $region52
      $region51: #{tpu_custom_call.1} parent=5 // pred_region
        %s327 = ssub.s32 %s17, 2
        // Predicated region
        $region53: #{tpu_custom_call.1} parent=51 // pred_check
          %p328 = pneg %p122
        $region54: #{tpu_custom_call.1} parent=51 // pred_check_branch
          %330 = sbr.rel (%p328) target = $region56
        $region55: #{tpu_custom_call.1} parent=51 // pred_region
          %s331 = sand.u32 %s107, 1
          %s332 = scalar_lea.sflag [#allocation4], %s331
          %s333 = sand.u32 %s107, 1
          %s334 = smul.addr %s333, 24
          %s335 = scalar_lea.vmem [#allocation7], %s334
          %337 = dma.done %s332, 384
        $region56: #{tpu_custom_call.1} parent=51 // pred_fallthru
          _
      $region52: #{tpu_custom_call.1} parent=5 // pred_fallthru
        _
    $region6: #{tpu_custom_call.1} parent=1 // loop_footer
      %s21 = sadd.s32 1, %s17
    $region7: #{tpu_custom_call.1} parent=1 // loop_footer_branch
      %16 = sbr.rel target = $region3
    $region8: #{tpu_custom_call.1} parent=1 // loop_exit
      _
    %338 = vsyncpa [#allocation3], 1
    %s339 = scalar_lea.sflag [#allocation3], 1
    %340 = vsyncpa %s339, 1
    %341 = vsyncpa [#allocation6], 1
    %s342 = scalar_lea.sflag [#allocation6], 1
    %343 = vsyncpa %s342, 1
    %344 = vsyncpa [#allocation4], 1
    %s345 = scalar_lea.sflag [#allocation4], 1
    %346 = vsyncpa %s345, 1

</llo_original>
